<compile_context>
chip_gen: v5e
topology: v5e:2x2
jax: 0.10.0
libtpu: 0.0.40
codegen_flags: <defaults>
</compile_context>

<pallas_src>
import jax
import jax.numpy as jnp
from jax.experimental import pallas as pl
from jax.experimental.pallas import tpu as pltpu


CHUNK = 256        # lanes per inner sub-tile (multiple of 128); (16,256) f32 = 4 vregs
TB_MAX = 16384     # max batch lanes per grid block; sweep 8192/16384/32768


def _block_batch(batch):
    """Pick (block, padded_batch): both multiples of CHUNK, padded % block == 0."""
    b = pl.cdiv(batch, CHUNK) * CHUNK
    tb = min(TB_MAX, b)
    bp = pl.cdiv(b, tb) * tb
    return tb, bp


def net_kernel(a_table_ref, s_ref, a_ref, wsT_ref, bs_ref, wo_ref, q_ref):
    # a_table_ref : SMEM (2,)    f32 -- relu(embed) @ W_out[16:] + b_out, per action id
    # s_ref       : VMEM (4, TB)  f32 -- states, batch on lanes
    # a_ref       : VMEM (1, TB)  i32 -- action ids, batch on lanes
    # wsT_ref     : VMEM (16, 4)  f32 -- state Linear weight, (out, in)
    # bs_ref      : VMEM (16, 1)  f32 -- state Linear bias (column)
    # wo_ref      : VMEM (16, 1)  f32 -- output-Linear weight slice (state half)
    # q_ref       : VMEM (1, TB)  f32
    tb = q_ref.shape[-1]
    nc = tb // CHUNK                      # TB is a multiple of CHUNK by construction

    wsT = wsT_ref[...]                    # (16, 4)
    # Hoisted lane-broadcasts: built ONCE per grid step and reused by every
    # chunk (JAX does not CSE broadcast_in_dim).  ~24 vregs total at CHUNK=256.
    w_cols = [jnp.broadcast_to(wsT[:, k:k + 1], (16, CHUNK)) for k in range(4)]
    bs_b = jnp.broadcast_to(bs_ref[...], (16, CHUNK))       # (16, CHUNK)
    wo_b = jnp.broadcast_to(wo_ref[...], (16, CHUNK))       # (16, CHUNK)

    t0 = a_table_ref[0]
    dt = a_table_ref[1] - a_table_ref[0]

    # Static unroll over CHUNK-wide lane sub-tiles: (16, CHUNK) intermediates
    # stay in vregs; nothing of size (16, TB) is ever materialized in VMEM.
    for c in range(nc):
        lo = c * CHUNK
        s_c = s_ref[:, lo:lo + CHUNK]                        # (4, CHUNK)

        # s_embed = relu(W_s^T @ s + b_s): 4 broadcast multiply-adds on the VPU.
        acc = bs_b
        for k in range(4):
            s_k = jnp.broadcast_to(s_c[k:k + 1, :], (16, CHUNK))   # sublane bcast
            acc = acc + w_cols[k] * s_k
        s_embed = jnp.maximum(acc, 0.0)                       # (16, CHUNK)

        # State half of the output Linear: weighted sublane reduction (XLU).
        q_s = jnp.sum(wo_b * s_embed, axis=0, keepdims=True)  # (1, CHUNK)

        # Action half: 2-entry table, b_out already folded in.
        # NOTE: ids outside {0,1} extrapolate linearly instead of erroring like
        # torch.nn.Embedding; inputs are assumed to be in {0, 1}.
        a_c = a_ref[:, lo:lo + CHUNK].astype(jnp.float32)     # (1, CHUNK)
        q_ref[:, lo:lo + CHUNK] = q_s + (t0 + a_c * dt)


def _fold_params(params):
    """Wrapper-side constant folding (pure algebra on the tiny parameters)."""
    a_table = (jax.nn.relu(params["embed"]) @ params["w_out_a"]
               + params["b_out"])[:, 0]                       # (2,)
    wsT = params["w_s"].T                                     # (16, 4)
    bs_col = params["b_s"].reshape(16, 1)                     # (16, 1)
    wo_col = params["w_out_s"]                                # (16, 1)
    return a_table, wsT, bs_col, wo_col


def net_forward_planar(s_t, a_t, params):
    """Fast path (no wrapper copies when the batch is block-aligned).

    s_t: (4, B) float32, a_t: (1, B) int32 -> q: (B,) float32.
    This is the natural layout for an RL replay buffer to store batches in.
    """
    B = s_t.shape[1]
    TB, Bp = _block_batch(B)
    if Bp != B:                                              # pad only if needed
        s_t = jnp.pad(s_t.astype(jnp.float32), ((0, 0), (0, Bp - B)))
        a_t = jnp.pad(a_t.astype(jnp.int32), ((0, 0), (0, Bp - B)))
    else:
        s_t = s_t.astype(jnp.float32)
        a_t = a_t.astype(jnp.int32)

    a_table, wsT, bs_col, wo_col = _fold_params(params)

    q_t = pl.pallas_call(
        net_kernel,
        out_shape=jax.ShapeDtypeStruct((1, Bp), jnp.float32),
        grid=(Bp // TB,),
        in_specs=[
            pl.BlockSpec(memory_space=pltpu.MemorySpace.SMEM),       # a_table (2,)
            pl.BlockSpec((4, TB), lambda i: (0, i)),                 # s (batch on lanes)
            pl.BlockSpec((1, TB), lambda i: (0, i)),                 # a
            pl.BlockSpec((16, 4), lambda i: (0, 0)),                 # W_s^T (resident)
            pl.BlockSpec((16, 1), lambda i: (0, 0)),                 # b_s
            pl.BlockSpec((16, 1), lambda i: (0, 0)),                 # W_out state half
        ],
        out_specs=pl.BlockSpec((1, TB), lambda i: (0, i)),
        compiler_params=pltpu.CompilerParams(
            dimension_semantics=("parallel",)),                      # v7x: 2 TCs
    )(a_table, s_t, a_t, wsT, bs_col, wo_col)

    return q_t[0, :B]


def net_forward(s, a, params):
    """PyTorch-layout API: s (B,4) float, a (B,) int -> q (B,) float32.

    The transpose below is one extra XLA copy of s/a; callers that can store
    batches batch-minor should call net_forward_planar directly.
    """
    B = s.shape[0]
    s_t = s.astype(jnp.float32).T                                    # (4, B)
    a_t = a.astype(jnp.int32).reshape(1, B)                          # (1, B)
    return net_forward_planar(s_t, a_t, params)


def init_params(key):
    """Deterministic parameter init matching the PyTorch module's shapes."""
    k_e, k_ws, k_bs, k_wo, k_bo = jax.random.split(key, 5)
    embed = jax.random.normal(k_e, (2, 16), jnp.float32)             # Embedding(2,16)
    lim_s = 1.0 / jnp.sqrt(4.0)
    w_s = jax.random.uniform(k_ws, (4, 16), jnp.float32, -lim_s, lim_s)   # Linear(4,16)
    b_s = jax.random.uniform(k_bs, (1, 16), jnp.float32, -lim_s, lim_s)
    lim_o = 1.0 / jnp.sqrt(32.0)
    w_out = jax.random.uniform(k_wo, (32, 1), jnp.float32, -lim_o, lim_o)  # Linear(32,1)
    b_out = jax.random.uniform(k_bo, (1, 1), jnp.float32, -lim_o, lim_o)
    return {
        "embed": embed,
        "w_s": w_s,
        "b_s": b_s,
        "w_out_s": w_out[:16, :],
        "w_out_a": w_out[16:, :],
        "b_out": b_out,
    }


def net_forward_ref(s, a, params):
    """Pure-JAX reference mirroring the PyTorch forward exactly."""
    a_embed = jax.nn.relu(params["embed"][a])
    s_embed = jax.nn.relu(s @ params["w_s"] + params["b_s"])
    sa = jnp.concatenate([s_embed, a_embed], axis=-1)
    w_out = jnp.concatenate([params["w_out_s"], params["w_out_a"]], axis=0)
    return jnp.squeeze(sa @ w_out + params["b_out"], axis=-1)


if __name__ == "__main__":
    key = jax.random.PRNGKey(0)
    k_p, k_s, k_a, k_s2, k_a2, k_s3, k_a3 = jax.random.split(key, 7)
    params = init_params(k_p)

    fwd = jax.jit(net_forward)
    fwd_planar = jax.jit(net_forward_planar)

    # 1) Small demo batch (module-scale), PyTorch-layout API.
    B = 8
    s = jax.random.normal(k_s, (B, 4), jnp.float32)
    a = jax.random.randint(k_a, (B,), 0, 2, jnp.int32)
    q = jax.block_until_ready(fwd(s, a, params))
    q_ref = net_forward_ref(s, a, params)
    assert q.shape == (B,)
    assert jnp.allclose(q, q_ref, atol=1e-5, rtol=1e-5)

    # 2) Non-aligned batch: exercises padding + multi-chunk inner loop.
    B2 = 1037
    s2 = jax.random.normal(k_s2, (B2, 4), jnp.float32)
    a2 = jax.random.randint(k_a2, (B2,), 0, 2, jnp.int32)
    q2 = jax.block_until_ready(fwd(s2, a2, params))
    q2_ref = net_forward_ref(s2, a2, params)
    assert q2.shape == (B2,)
    assert jnp.allclose(q2, q2_ref, atol=1e-5, rtol=1e-5)

    # 3) Block-aligned planar fast path: no wrapper copies, multi-block grid
    #    (2 blocks -> both v7x TensorCores get work), 64 inner chunks/block.
    B3 = 2 * TB_MAX
    s3 = jax.random.normal(k_s3, (B3, 4), jnp.float32)
    a3 = jax.random.randint(k_a3, (B3,), 0, 2, jnp.int32)
    q3 = jax.block_until_ready(
        fwd_planar(jnp.asarray(s3.T), a3.reshape(1, B3), params))
    q3_ref = net_forward_ref(s3, a3, params)
    assert q3.shape == (B3,)
    assert jnp.allclose(q3, q3_ref, atol=1e-5, rtol=1e-5)

    print("KERNEL_OK")
</pallas_src>

<mosaic_0001>
module attributes {stable_mosaic.version = 11 : i64} {
  func.func @net_kernel(%arg0: i32, %arg1: memref<2xf32, #tpu.memory_space<smem>>, %arg2: memref<4x256xf32, #tpu.memory_space<vmem>>, %arg3: memref<1x256xi32, #tpu.memory_space<vmem>>, %arg4: memref<16x4xf32, #tpu.memory_space<vmem>>, %arg5: memref<16x1xf32, #tpu.memory_space<vmem>>, %arg6: memref<16x1xf32, #tpu.memory_space<vmem>>, %arg7: memref<1x256xf32, #tpu.memory_space<vmem>>) attributes {dimension_semantics = [#tpu.dimension_semantics<parallel>], iteration_bounds = array<i64: 1>, scalar_prefetch = 0 : i64, scratch_operands = 0 : i64, tpu.core_type = #tpu.core_type<tc>, window_params = [{transform_indices = @transform_0, window_bounds = array<i64: 2>}, {transform_indices = @transform_1, window_bounds = array<i64: 4, 256>}, {transform_indices = @transform_2, window_bounds = array<i64: 1, 256>}, {pipeline_mode = #tpu.pipeline_mode<synchronous>, transform_indices = @transform_3, window_bounds = array<i64: 16, 4>}, {pipeline_mode = #tpu.pipeline_mode<synchronous>, transform_indices = @transform_4, window_bounds = array<i64: 16, 1>}, {pipeline_mode = #tpu.pipeline_mode<synchronous>, transform_indices = @transform_5, window_bounds = array<i64: 16, 1>}, {transform_indices = @transform_6, window_bounds = array<i64: 1, 256>}]} {
    %c0 = arith.constant 0 : index
    %c0_0 = arith.constant 0 : index
    %0 = vector.load %arg4[%c0, %c0_0] : memref<16x4xf32, #tpu.memory_space<vmem>>, vector<16x4xf32>
    %1 = vector.extract_strided_slice %0 {offsets = [0, 0], sizes = [16, 1], strides = [1, 1]} : vector<16x4xf32> to vector<16x1xf32>
    %2 = vector.shape_cast %1 : vector<16x1xf32> to vector<16x1xf32>
    %3 = vector.broadcast %2 : vector<16x1xf32> to vector<16x256xf32>
    %4 = vector.extract_strided_slice %0 {offsets = [0, 1], sizes = [16, 1], strides = [1, 1]} : vector<16x4xf32> to vector<16x1xf32>
    %5 = vector.shape_cast %4 : vector<16x1xf32> to vector<16x1xf32>
    %6 = vector.broadcast %5 : vector<16x1xf32> to vector<16x256xf32>
    %7 = vector.extract_strided_slice %0 {offsets = [0, 2], sizes = [16, 1], strides = [1, 1]} : vector<16x4xf32> to vector<16x1xf32>
    %8 = vector.shape_cast %7 : vector<16x1xf32> to vector<16x1xf32>
    %9 = vector.broadcast %8 : vector<16x1xf32> to vector<16x256xf32>
    %10 = vector.extract_strided_slice %0 {offsets = [0, 3], sizes = [16, 1], strides = [1, 1]} : vector<16x4xf32> to vector<16x1xf32>
    %11 = vector.shape_cast %10 : vector<16x1xf32> to vector<16x1xf32>
    %12 = vector.broadcast %11 : vector<16x1xf32> to vector<16x256xf32>
    %c0_1 = arith.constant 0 : index
    %c0_2 = arith.constant 0 : index
    %13 = vector.load %arg5[%c0_1, %c0_2] : memref<16x1xf32, #tpu.memory_space<vmem>>, vector<16x1xf32>
    %14 = vector.shape_cast %13 : vector<16x1xf32> to vector<16x1xf32>
    %15 = vector.broadcast %14 : vector<16x1xf32> to vector<16x256xf32>
    %c0_3 = arith.constant 0 : index
    %c0_4 = arith.constant 0 : index
    %16 = vector.load %arg6[%c0_3, %c0_4] : memref<16x1xf32, #tpu.memory_space<vmem>>, vector<16x1xf32>
    %17 = vector.shape_cast %16 : vector<16x1xf32> to vector<16x1xf32>
    %18 = vector.broadcast %17 : vector<16x1xf32> to vector<16x256xf32>
    %c0_5 = arith.constant 0 : index
    %19 = memref.load %arg1[%c0_5] : memref<2xf32, #tpu.memory_space<smem>>
    %c1 = arith.constant 1 : index
    %20 = memref.load %arg1[%c1] : memref<2xf32, #tpu.memory_space<smem>>
    %c0_6 = arith.constant 0 : index
    %21 = memref.load %arg1[%c0_6] : memref<2xf32, #tpu.memory_space<smem>>
    %22 = arith.subf %20, %21 : f32
    %c0_7 = arith.constant 0 : index
    %c0_8 = arith.constant 0 : index
    %23 = vector.load %arg2[%c0_7, %c0_8] : memref<4x256xf32, #tpu.memory_space<vmem>>, vector<4x256xf32>
    %24 = vector.extract_strided_slice %23 {offsets = [0, 0], sizes = [1, 256], strides = [1, 1]} : vector<4x256xf32> to vector<1x256xf32>
    %25 = vector.shape_cast %24 : vector<1x256xf32> to vector<1x256xf32>
    %26 = vector.broadcast %25 : vector<1x256xf32> to vector<16x256xf32>
    %27 = arith.mulf %3, %26 : vector<16x256xf32>
    %28 = arith.addf %15, %27 : vector<16x256xf32>
    %29 = vector.extract_strided_slice %23 {offsets = [1, 0], sizes = [1, 256], strides = [1, 1]} : vector<4x256xf32> to vector<1x256xf32>
    %30 = vector.shape_cast %29 : vector<1x256xf32> to vector<1x256xf32>
    %31 = vector.broadcast %30 : vector<1x256xf32> to vector<16x256xf32>
    %32 = arith.mulf %6, %31 : vector<16x256xf32>
    %33 = arith.addf %28, %32 : vector<16x256xf32>
    %34 = vector.extract_strided_slice %23 {offsets = [2, 0], sizes = [1, 256], strides = [1, 1]} : vector<4x256xf32> to vector<1x256xf32>
    %35 = vector.shape_cast %34 : vector<1x256xf32> to vector<1x256xf32>
    %36 = vector.broadcast %35 : vector<1x256xf32> to vector<16x256xf32>
    %37 = arith.mulf %9, %36 : vector<16x256xf32>
    %38 = arith.addf %33, %37 : vector<16x256xf32>
    %39 = vector.extract_strided_slice %23 {offsets = [3, 0], sizes = [1, 256], strides = [1, 1]} : vector<4x256xf32> to vector<1x256xf32>
    %40 = vector.shape_cast %39 : vector<1x256xf32> to vector<1x256xf32>
    %41 = vector.broadcast %40 : vector<1x256xf32> to vector<16x256xf32>
    %42 = arith.mulf %12, %41 : vector<16x256xf32>
    %43 = arith.addf %38, %42 : vector<16x256xf32>
    %cst = arith.constant 0.000000e+00 : f32
    %44 = vector.broadcast %cst : f32 to vector<16x256xf32>
    %45 = arith.maximumf %43, %44 : vector<16x256xf32>
    %46 = arith.mulf %18, %45 : vector<16x256xf32>
    %cst_9 = arith.constant dense<0.000000e+00> : vector<256xf32>
    %47 = vector.multi_reduction <add>, %46, %cst_9 [0] : vector<16x256xf32> to vector<256xf32>
    %48 = vector.shape_cast %47 : vector<256xf32> to vector<1x256xf32>
    %c0_10 = arith.constant 0 : index
    %c0_11 = arith.constant 0 : index
    %49 = vector.load %arg3[%c0_10, %c0_11] : memref<1x256xi32, #tpu.memory_space<vmem>>, vector<1x256xi32>
    %50 = arith.sitofp %49 : vector<1x256xi32> to vector<1x256xf32>
    %51 = vector.broadcast %22 : f32 to vector<1x256xf32>
    %52 = arith.mulf %50, %51 : vector<1x256xf32>
    %53 = vector.broadcast %19 : f32 to vector<1x256xf32>
    %54 = arith.addf %53, %52 : vector<1x256xf32>
    %55 = arith.addf %48, %54 : vector<1x256xf32>
    %c0_12 = arith.constant 0 : index
    %c0_13 = arith.constant 0 : index
    %56 = vector.load %arg7[%c0_12, %c0_13] : memref<1x256xf32, #tpu.memory_space<vmem>>, vector<1x256xf32>
    tpu.vector_store %arg7[%c0_12, %c0_13], %55 {strides = array<i32>} : memref<1x256xf32, #tpu.memory_space<vmem>>, vector<1x256xf32>,
    return
  }
  func.func @transform_0(%arg0: i32) -> i32 {
    %c0_i32 = arith.constant 0 : i32
    %c0_i32_0 = arith.constant 0 : i32
    return %c0_i32 : i32
  }
  func.func @transform_1(%arg0: i32) -> (i32, i32) {
    %c0_i32 = arith.constant 0 : i32
    %c0_i32_0 = arith.constant 0 : i32
    return %c0_i32, %arg0 : i32, i32
  }
  func.func @transform_2(%arg0: i32) -> (i32, i32) {
    %c0_i32 = arith.constant 0 : i32
    %c0_i32_0 = arith.constant 0 : i32
    return %c0_i32, %arg0 : i32, i32
  }
  func.func @transform_3(%arg0: i32) -> (i32, i32) {
    %c0_i32 = arith.constant 0 : i32
    %c0_i32_0 = arith.constant 0 : i32
    %c0_i32_1 = arith.constant 0 : i32
    return %c0_i32, %c0_i32_0 : i32, i32
  }
  func.func @transform_4(%arg0: i32) -> (i32, i32) {
    %c0_i32 = arith.constant 0 : i32
    %c0_i32_0 = arith.constant 0 : i32
    %c0_i32_1 = arith.constant 0 : i32
    return %c0_i32, %c0_i32_0 : i32, i32
  }
  func.func @transform_5(%arg0: i32) -> (i32, i32) {
    %c0_i32 = arith.constant 0 : i32
    %c0_i32_0 = arith.constant 0 : i32
    %c0_i32_1 = arith.constant 0 : i32
    return %c0_i32, %c0_i32_0 : i32, i32
  }
  func.func @transform_6(%arg0: i32) -> (i32, i32) {
    %c0_i32 = arith.constant 0 : i32
    %c0_i32_0 = arith.constant 0 : i32
    return %c0_i32, %arg0 : i32, i32
  }
}

</mosaic_0001>

<llo_original>
// kernel: net_forward.1
$region0: #{net_forward.1}
  #allocation0 [shape = 'u32[]', space=smem, size = 0x4, offset = 0x4, fixed_abs, tag = 'smem constant byte address 0x4 - core index']
  #allocation1 [shape = 'u32[72,128]{1,0:T(1,128)}', space=vmem, size = 0x9000, scoped, tag = 'internal scratch']
  %s0 = inlined_call_operand.vmem [shape: f32[2], index: 0, kind: input, shape index: {}]
  %s1 = inlined_call_operand.vmem [shape: f32[4,256], index: 1, kind: input, shape index: {}]
  %s2 = inlined_call_operand.vmem [shape: s32[1,256], index: 2, kind: input, shape index: {}]
  %s3 = inlined_call_operand.vmem [shape: f32[16,4], index: 3, kind: input, shape index: {}]
  %s4 = inlined_call_operand.vmem [shape: f32[16,1], index: 4, kind: input, shape index: {}]
  %s5 = inlined_call_operand.vmem [shape: f32[16,1], index: 5, kind: input, shape index: {}]
  %s6 = inlined_call_operand.vmem [shape: f32[1,256], index: 6, kind: output, shape index: {}]
  %s7 = sld [smem:[#allocation0]]
  $region38: #{net_forward.1} parent=0
    _
  %s9 = ssub.s32 1, %s7
  %s10 = scalar_select 0, %s9, %s7
  $region1: #{net_forward.1} parent=0
    #allocation2 [shape = 'u8[512]{0}', space=smem, size = 0x200, scoped, tag = 'input window, operand 0, single buffered']
    #allocation3 [shape = 's32[1]{0}', space=sflag, size = 0x4, scoped, tag = 'scoped memory for net_forward.1']
    %11 = vsyncpa [#allocation3], 0
    // Predicated region
    $region2: #{net_forward.1} parent=1 // pred_check
      _
    $region3: #{net_forward.1} parent=1 // pred_check_branch
      %13 = sbr.rel (0) target = $region5
    $region4: #{net_forward.1} parent=1 // pred_region
      %15 = vsyncadd [#allocation3], 0
      %s17 = sshll.u32 %s0, 4
      %s18 = int_to_ptr.vmem [resolvable:$true] %s17
      %20 = dma.vmem_to_smem %s18, 16, [#allocation2], [#allocation3]
    $region5: #{net_forward.1} parent=1 // pred_fallthru
      _
    // Predicated region
    $region6: #{net_forward.1} parent=1 // pred_check
      _
    $region7: #{net_forward.1} parent=1 // pred_check_branch
      %22 = sbr.rel (0) target = $region9
    $region8: #{net_forward.1} parent=1 // pred_region
      _
    $region9: #{net_forward.1} parent=1 // pred_fallthru
      _
    // Predicated region
    $region10: #{net_forward.1} parent=1 // pred_check
      _
    $region11: #{net_forward.1} parent=1 // pred_check_branch
      %24 = sbr.rel (0) target = $region13
    $region12: #{net_forward.1} parent=1 // pred_region
      _
    $region13: #{net_forward.1} parent=1 // pred_fallthru
      _
    // Predicated region
    $region14: #{net_forward.1} parent=1 // pred_check
      _
    $region15: #{net_forward.1} parent=1 // pred_check_branch
      %26 = sbr.rel (0) target = $region17
    $region16: #{net_forward.1} parent=1 // pred_region
      _
    $region17: #{net_forward.1} parent=1 // pred_fallthru
      _
    // Predicated region
    $region18: #{net_forward.1} parent=1 // pred_check
      _
    $region19: #{net_forward.1} parent=1 // pred_check_branch
      %28 = sbr.rel (0) target = $region21
    $region20: #{net_forward.1} parent=1 // pred_region
      _
    $region21: #{net_forward.1} parent=1 // pred_fallthru
      _
    // Predicated region
    $region22: #{net_forward.1} parent=1 // pred_check
      _
    $region23: #{net_forward.1} parent=1 // pred_check_branch
      %30 = sbr.rel (0) target = $region25
    $region24: #{net_forward.1} parent=1 // pred_region
      _
    $region25: #{net_forward.1} parent=1 // pred_fallthru
      _
    // Predicated region
    $region26: #{net_forward.1} parent=1 // pred_check
      _
    $region27: #{net_forward.1} parent=1 // pred_check_branch
      %32 = sbr.rel (0) target = $region29
    $region28: #{net_forward.1} parent=1 // pred_region
      %34 = dma.done [#allocation3], 16
    $region29: #{net_forward.1} parent=1 // pred_fallthru
      _
    %35 = sfence
    %v36 = vld [vmem:[%s3] sm:$0xff]
    %v37 = vld [vmem:[%s3 + $0x8] sm:$0xff]
    %39 = vset.pattern.permute.xlu0 0
    %40 = vperm.xlu0 %39, %v36
    %v41 = vpop.permute.xlu0 %40
    %44 = vset.pattern.permute.xlu0 0
    %45 = vperm.xlu0 %44, %v37
    %v46 = vpop.permute.xlu0 %45
    %48 = vset.pattern.permute.xlu0 1
    %49 = vperm.xlu0 %48, %v36
    %v50 = vpop.permute.xlu0 %49
    %52 = vset.pattern.permute.xlu0 1
    %53 = vperm.xlu0 %52, %v37
    %v54 = vpop.permute.xlu0 %53
    %56 = vset.pattern.permute.xlu0 2
    %57 = vperm.xlu0 %56, %v36
    %v58 = vpop.permute.xlu0 %57
    %60 = vset.pattern.permute.xlu0 2
    %61 = vperm.xlu0 %60, %v37
    %v62 = vpop.permute.xlu0 %61
    %64 = vset.pattern.permute.xlu0 3
    %65 = vperm.xlu0 %64, %v36
    %v66 = vpop.permute.xlu0 %65
    %68 = vset.pattern.permute.xlu0 3
    %69 = vperm.xlu0 %68, %v37
    %v70 = vpop.permute.xlu0 %69
    %v72 = vld [vmem:[%s4] sm:$0xff]
    %v73 = vld [vmem:[%s4 + $0x8] sm:$0xff]
    %75 = vset.pattern.permute.xlu0 0
    %76 = vperm.xlu0 %75, %v72
    %v77 = vpop.permute.xlu0 %76
    %80 = vset.pattern.permute.xlu0 0
    %81 = vperm.xlu0 %80, %v73
    %v82 = vpop.permute.xlu0 %81
    %v84 = vld [vmem:[%s5] sm:$0xff]
    %v85 = vld [vmem:[%s5 + $0x8] sm:$0xff]
    %87 = vset.pattern.permute.xlu0 0
    %88 = vperm.xlu0 %87, %v84
    %v89 = vpop.permute.xlu0 %88
    %92 = vset.pattern.permute.xlu0 0
    %93 = vperm.xlu0 %92, %v85
    %v94 = vpop.permute.xlu0 %93
    %s96 = sld [smem:[#allocation2]]
    %s97 = sld [smem:[#allocation2 + $0x1]]
    %s98 = ssub.f32 %s97, %s96
    %v99 = vld [vmem:[%s1] sm:$0xff]
    %v101 = vperm.slane %v99, 0
    %v102 = vperm.slane %v99, 4
    %v105 = vperm.slane %v101, 0
    %v106 = vperm.slane %v102, 0
    %v107 = vmul.f32 %v41, %v105
    %v108 = vmul.f32 %v41, %v106
    %v109 = vmul.f32 %v46, %v105
    %v110 = vmul.f32 %v46, %v106
    %v111 = vadd.f32 %v77, %v107
    %v112 = vadd.f32 %v77, %v108
    %v113 = vadd.f32 %v82, %v109
    %v114 = vadd.f32 %v82, %v110
    %v115 = vperm.slane %v99, 1
    %v116 = vperm.slane %v99, 5
    %v119 = vperm.slane %v115, 1
    %v120 = vperm.slane %v116, 1
    %v121 = vmul.f32 %v50, %v119
    %v122 = vmul.f32 %v50, %v120
    %v123 = vmul.f32 %v54, %v119
    %v124 = vmul.f32 %v54, %v120
    %v125 = vadd.f32 %v111, %v121
    %v126 = vadd.f32 %v112, %v122
    %v127 = vadd.f32 %v113, %v123
    %v128 = vadd.f32 %v114, %v124
    %v129 = vperm.slane %v99, 2
    %v130 = vperm.slane %v99, 6
    %v133 = vperm.slane %v129, 2
    %v134 = vperm.slane %v130, 2
    %v135 = vmul.f32 %v58, %v133
    %v136 = vmul.f32 %v58, %v134
    %v137 = vmul.f32 %v62, %v133
    %v138 = vmul.f32 %v62, %v134
    %v139 = vadd.f32 %v125, %v135
    %v140 = vadd.f32 %v126, %v136
    %v141 = vadd.f32 %v127, %v137
    %v142 = vadd.f32 %v128, %v138
    %v143 = vperm.slane %v99, 3
    %v144 = vperm.slane %v99, 7
    %v147 = vperm.slane %v143, 3
    %v148 = vperm.slane %v144, 3
    %v149 = vmul.f32 %v66, %v147
    %v150 = vmul.f32 %v66, %v148
    %v151 = vmul.f32 %v70, %v147
    %v152 = vmul.f32 %v70, %v148
    %v153 = vadd.f32 %v139, %v149
    %v154 = vadd.f32 %v140, %v150
    %v155 = vadd.f32 %v141, %v151
    %v156 = vadd.f32 %v142, %v152
    %v157 = vmax.f32 %v153, 0.0
    %v158 = vmax.f32 %v154, 0.0
    %v159 = vmax.f32 %v155, 0.0
    %v160 = vmax.f32 %v156, 0.0
    %v161 = vmul.f32 %v89, %v157
    %v162 = vmul.f32 %v89, %v158
    %v163 = vmul.f32 %v94, %v159
    %v164 = vmul.f32 %v94, %v160
    %v165 = vadd.f32 %v161, %v163
    %v166 = vrot.slane %v165, 4
    %v167 = vadd.f32 %v165, %v166
    %v168 = vrot.slane %v167, 2
    %v169 = vadd.f32 %v167, %v168
    %v170 = vrot.slane %v169, 1
    %v171 = vadd.f32 %v169, %v170
    %v172 = vadd.f32 %v162, %v164
    %v173 = vrot.slane %v172, 4
    %v174 = vadd.f32 %v172, %v173
    %v175 = vrot.slane %v174, 2
    %v176 = vadd.f32 %v174, %v175
    %v177 = vrot.slane %v176, 1
    %v178 = vadd.f32 %v176, %v177
    %v179 = vld [vmem:[%s2] sm:$0x3]
    %v180 = vcvt.s32.f32 %v179
    %v181 = vstv %s98
    %v182 = vmul.f32 %v180, %v181
    %v183 = vstv %s96
    %v184 = vadd.f32 %v183, %v182
    %v186 = vperm.slane %v184, 0
    %v187 = vperm.slane %v184, 1
    %v190 = vadd.f32 %v171, %v186
    %v191 = vadd.f32 %v178, %v187
    %v194 = vrot.slane %v191, 7
    %vm195 = vcmask 1040384
    %v196 = vsel %vm195, %v190, %v194
    %v198 = vlaneseq
    %vm199 = vcmp.ge.s32.totalorder %v198, 0
    %vm200 = vcmp.lt.s32.totalorder %v198, 256
    %vm201 = vmand %vm199, %vm200
    %202 = vst.msk [vmem:[%s6] sm:$0x3] %vm201, %v196
    // Predicated region
    $region30: #{net_forward.1} parent=1 // pred_check
      _
    $region31: #{net_forward.1} parent=1 // pred_check_branch
      %204 = sbr.rel (0) target = $region33
    $region32: #{net_forward.1} parent=1 // pred_region
      _
    $region33: #{net_forward.1} parent=1 // pred_fallthru
      _
    // Predicated region
    $region34: #{net_forward.1} parent=1 // pred_check
      _
    $region35: #{net_forward.1} parent=1 // pred_check_branch
      %206 = sbr.rel (0) target = $region37
    $region36: #{net_forward.1} parent=1 // pred_region
      _
    $region37: #{net_forward.1} parent=1 // pred_fallthru
      _
    %207 = vsyncpa [#allocation3], 1

</llo_original>
